<compile_context>
chip_gen: v5e
topology: v5e:2x2
jax: 0.10.0
libtpu: 0.0.40
codegen_flags: <defaults>
</compile_context>

<pallas_src>
import functools

import jax
import jax.numpy as jnp
from jax.experimental import pallas as pl
from jax.experimental.pallas import tpu as pltpu

LANE = 128  # batch-tile granularity (lane width)


def _round_up(n, m):
    return ((n + m - 1) // m) * m


# ----------------------------- kernel -------------------------------------
def mlp_kernel(x_ref, w_ref, b_ref, o_ref, *, feat):
    """x_ref: (TB, F) f32; w_ref: packed bf16 weights; b_ref: packed f32 biases/w5."""
    f_off = _round_up(feat, 16)  # bf16 sublane-friendly row offsets in the slab

    # Weight views (static slices of the resident VMEM slab).
    w1 = w_ref[0:feat, :]                       # (F, 32)  bf16
    w2 = w_ref[f_off:f_off + 32, 0:16]          # (32, 16) bf16
    w3 = w_ref[f_off + 32:f_off + 48, 0:16]     # (16, 16) bf16
    w4 = w_ref[f_off + 48:f_off + 64, 0:8]      # (16, 8)  bf16

    b1 = b_ref[0:1, 0:32]                       # (1, 32) f32
    b2 = b_ref[1:2, 0:16]
    b3 = b_ref[2:3, 0:16]
    b4 = b_ref[3:4, 0:8]
    b5 = b_ref[4:5, 0:1]                        # (1, 1)  f32
    w5 = b_ref[5:6, 0:8]                        # (1, 8)  f32 (fc5 weight row)

    x = x_ref[...].astype(jnp.bfloat16)         # cast in-kernel (hidden under EUP)

    # fc1 + tanh   (dropout do1 is identity in eval mode)
    h = jnp.tanh(jnp.dot(x, w1, preferred_element_type=jnp.float32) + b1)
    # fc2 + tanh   (dropout do2 is identity in eval mode)
    h = jnp.tanh(jnp.dot(h.astype(jnp.bfloat16), w2,
                         preferred_element_type=jnp.float32) + b2)
    # fc3 + tanh
    h = jnp.tanh(jnp.dot(h.astype(jnp.bfloat16), w3,
                         preferred_element_type=jnp.float32) + b3)
    # fc4 + tanh   (true width 8 — no lane padding)
    h = jnp.tanh(jnp.dot(h.astype(jnp.bfloat16), w4,
                         preferred_element_type=jnp.float32) + b4)   # (TB, 8) f32

    # fc5: VPU multiply + 8-lane reduce (avoids a 1-wide f32 MXU matmul).
    z = jnp.sum(h * w5, axis=-1, keepdims=True) + b5                 # (TB, 1) f32
    # Numerically stable sigmoid: sigmoid(z) == 0.5 * (1 + tanh(z / 2)).
    o_ref[...] = 0.5 * (1.0 + jnp.tanh(0.5 * z))


# ----------------------------- wrapper -------------------------------------
def _pick_tile_b(batch, requested):
    """Batch tile: multiple of 128, >=2 grid steps when possible, divides b_pad."""
    b_ceil = _round_up(batch, LANE)
    t = max(LANE, (requested // LANE) * LANE)
    t = min(t, b_ceil)
    if b_ceil >= 2 * LANE:                      # >=2 steps -> megacore on v7x
        t = min(t, max(LANE, (b_ceil // 2) // LANE * LANE))
    while b_ceil % t != 0:                      # keep batch-pad waste < 128 rows
        t -= LANE
    return t, b_ceil


@functools.partial(jax.jit, static_argnames=("tile_b",))
def net_forward(x, w_slab, b_slab, tile_b=1024):
    """x: (B, F) float32. Returns sigmoid output of shape (B, 1) float32."""
    B, F = x.shape
    t, b_pad = _pick_tile_b(B, tile_b)
    if b_pad != B:
        x = jnp.pad(x, ((0, b_pad - B), (0, 0)))

    kernel = functools.partial(mlp_kernel, feat=F)
    out = pl.pallas_call(
        kernel,
        out_shape=jax.ShapeDtypeStruct((b_pad, 1), jnp.float32),
        grid=(b_pad // t,),
        in_specs=[
            pl.BlockSpec((t, F), lambda i: (i, 0)),          # x streamed/tiled
            pl.BlockSpec(w_slab.shape, lambda i: (0, 0)),    # weights resident
            pl.BlockSpec(b_slab.shape, lambda i: (0, 0)),    # biases/w5 resident
        ],
        out_specs=pl.BlockSpec((t, 1), lambda i: (i, 0)),
        compiler_params=pltpu.CompilerParams(
            dimension_semantics=("parallel",)),              # megacore on v7x
    )(x, w_slab, b_slab)
    return out[:B]


# ------------------------ pure-JAX reference --------------------------------
def net_reference(x, params):
    """Reference with the same bf16-input / f32-accumulate matmul numerics."""
    def dot_bf16(a, w):
        return jnp.dot(a.astype(jnp.bfloat16), w.astype(jnp.bfloat16),
                       preferred_element_type=jnp.float32)

    h = jnp.tanh(dot_bf16(x, params["w1"]) + params["b1"])
    h = jnp.tanh(dot_bf16(h, params["w2"]) + params["b2"])
    h = jnp.tanh(dot_bf16(h, params["w3"]) + params["b3"])
    h = jnp.tanh(dot_bf16(h, params["w4"]) + params["b4"])
    z = jnp.dot(h, params["w5"], preferred_element_type=jnp.float32) + params["b5"]
    return 0.5 * (1.0 + jnp.tanh(0.5 * z))


# ----------------------- deterministic param init --------------------------
def init_linear(key, fan_in, fan_out):
    """PyTorch nn.Linear default init: U(-1/sqrt(fan_in), 1/sqrt(fan_in))."""
    kw, kb = jax.random.split(key)
    bound = 1.0 / jnp.sqrt(jnp.float32(fan_in))
    w = jax.random.uniform(kw, (fan_in, fan_out), jnp.float32, -bound, bound)
    b = jax.random.uniform(kb, (fan_out,), jnp.float32, -bound, bound)
    return w, b


def make_params(key, in_features):
    dims = [(in_features, 32), (32, 16), (16, 16), (16, 8), (8, 1)]
    keys = jax.random.split(key, len(dims))
    (w1, b1), (w2, b2), (w3, b3), (w4, b4), (w5, b5) = [
        init_linear(k, fi, fo) for (fi, fo), k in zip(dims, keys)]
    return {"w1": w1, "b1": b1, "w2": w2, "b2": b2, "w3": w3, "b3": b3,
            "w4": w4, "b4": b4, "w5": w5, "b5": b5}


def pack_params(params, feat):
    """Pack w1..w4 into one bf16 slab and biases + fc5 weight into one f32 slab."""
    f_off = _round_up(feat, 16)
    w = jnp.zeros((f_off + 64, 32), jnp.float32)
    w = w.at[0:feat, 0:32].set(params["w1"])
    w = w.at[f_off:f_off + 32, 0:16].set(params["w2"])
    w = w.at[f_off + 32:f_off + 48, 0:16].set(params["w3"])
    w = w.at[f_off + 48:f_off + 64, 0:8].set(params["w4"])
    w_slab = w.astype(jnp.bfloat16)

    b = jnp.zeros((6, 32), jnp.float32)
    b = b.at[0, 0:32].set(params["b1"])
    b = b.at[1, 0:16].set(params["b2"])
    b = b.at[2, 0:16].set(params["b3"])
    b = b.at[3, 0:8].set(params["b4"])
    b = b.at[4, 0:1].set(params["b5"])
    b = b.at[5, 0:8].set(params["w5"][:, 0])      # fc5 weight as an f32 row
    return w_slab, b


# ------------------------------- main ---------------------------------------
if __name__ == "__main__":
    key = jax.random.PRNGKey(0)
    k_x, k_p = jax.random.split(key)

    B, F = 256, 16   # small batch; F=16 is synthetic (original feature list is empty)
    x = jax.random.normal(k_x, (B, F), jnp.float32)
    params = make_params(k_p, F)
    w_slab, b_slab = pack_params(params, F)

    out = net_forward(x, w_slab, b_slab, tile_b=1024)  # -> tile 128, 2 grid steps
    out = jax.block_until_ready(out)
    ref = net_reference(x, params)

    assert out.shape == (B, 1)
    assert bool(jnp.all((out >= 0.0) & (out <= 1.0)))
    assert bool(jnp.allclose(out, ref, atol=1e-3, rtol=1e-3))
    print("KERNEL_OK")
</pallas_src>

<mosaic_0001>
module attributes {stable_mosaic.version = 11 : i64} {
  func.func @mlp_kernel(%arg0: i32, %arg1: memref<128x16xf32, #tpu.memory_space<vmem>>, %arg2: memref<80x32xbf16, #tpu.memory_space<vmem>>, %arg3: memref<6x32xf32, #tpu.memory_space<vmem>>, %arg4: memref<128x1xf32, #tpu.memory_space<vmem>>) attributes {dimension_semantics = [#tpu.dimension_semantics<parallel>], iteration_bounds = array<i64: 2>, scalar_prefetch = 0 : i64, scratch_operands = 0 : i64, tpu.core_type = #tpu.core_type<tc>, window_params = [{transform_indices = @transform_0, window_bounds = array<i64: 128, 16>}, {pipeline_mode = #tpu.pipeline_mode<synchronous>, transform_indices = @transform_1, window_bounds = array<i64: 80, 32>}, {pipeline_mode = #tpu.pipeline_mode<synchronous>, transform_indices = @transform_2, window_bounds = array<i64: 6, 32>}, {transform_indices = @transform_3, window_bounds = array<i64: 128, 1>}]} {
    %c0 = arith.constant 0 : index
    %c0_0 = arith.constant 0 : index
    %0 = vector.load %arg2[%c0, %c0_0] : memref<80x32xbf16, #tpu.memory_space<vmem>>, vector<16x32xbf16>
    %c16 = arith.constant 16 : index
    %c0_1 = arith.constant 0 : index
    %1 = vector.load %arg2[%c16, %c0_1] : memref<80x32xbf16, #tpu.memory_space<vmem>>, vector<32x16xbf16>
    %c48 = arith.constant 48 : index
    %c0_2 = arith.constant 0 : index
    %2 = vector.load %arg2[%c48, %c0_2] : memref<80x32xbf16, #tpu.memory_space<vmem>>, vector<16x16xbf16>
    %c64 = arith.constant 64 : index
    %c0_3 = arith.constant 0 : index
    %3 = vector.load %arg2[%c64, %c0_3] : memref<80x32xbf16, #tpu.memory_space<vmem>>, vector<16x8xbf16>
    %c0_4 = arith.constant 0 : index
    %c0_5 = arith.constant 0 : index
    %4 = vector.load %arg3[%c0_4, %c0_5] : memref<6x32xf32, #tpu.memory_space<vmem>>, vector<1x32xf32>
    %c1 = arith.constant 1 : index
    %c0_6 = arith.constant 0 : index
    %5 = vector.load %arg3[%c1, %c0_6] : memref<6x32xf32, #tpu.memory_space<vmem>>, vector<1x16xf32>
    %c2 = arith.constant 2 : index
    %c0_7 = arith.constant 0 : index
    %6 = vector.load %arg3[%c2, %c0_7] : memref<6x32xf32, #tpu.memory_space<vmem>>, vector<1x16xf32>
    %c3 = arith.constant 3 : index
    %c0_8 = arith.constant 0 : index
    %7 = vector.load %arg3[%c3, %c0_8] : memref<6x32xf32, #tpu.memory_space<vmem>>, vector<1x8xf32>
    %c4 = arith.constant 4 : index
    %c0_9 = arith.constant 0 : index
    %8 = vector.load %arg3[%c4, %c0_9] : memref<6x32xf32, #tpu.memory_space<vmem>>, vector<1x1xf32>
    %c5 = arith.constant 5 : index
    %c0_10 = arith.constant 0 : index
    %9 = vector.load %arg3[%c5, %c0_10] : memref<6x32xf32, #tpu.memory_space<vmem>>, vector<1x8xf32>
    %c0_11 = arith.constant 0 : index
    %c0_12 = arith.constant 0 : index
    %10 = vector.load %arg1[%c0_11, %c0_12] : memref<128x16xf32, #tpu.memory_space<vmem>>, vector<128x16xf32>
    %11 = arith.truncf %10 : vector<128x16xf32> to vector<128x16xbf16>
    %cst = arith.constant dense<0.000000e+00> : vector<128x32xf32>
    %12 = tpu.matmul %11, %0, %cst {dimension_numbers = #tpu.dot_dimension_numbers<[1], [0], [0], [1], [0, 0, 1, 1], [], []>} : vector<128x16xbf16>, vector<16x32xbf16>, vector<128x32xf32> -> vector<128x32xf32>
    %13 = vector.broadcast %4 : vector<1x32xf32> to vector<128x32xf32>
    %14 = arith.addf %12, %13 : vector<128x32xf32>
    %15 = math.tanh %14 : vector<128x32xf32>
    %16 = arith.truncf %15 : vector<128x32xf32> to vector<128x32xbf16>
    %cst_13 = arith.constant dense<0.000000e+00> : vector<128x16xf32>
    %17 = tpu.matmul %16, %1, %cst_13 {dimension_numbers = #tpu.dot_dimension_numbers<[1], [0], [0], [1], [0, 0, 1, 1], [], []>} : vector<128x32xbf16>, vector<32x16xbf16>, vector<128x16xf32> -> vector<128x16xf32>
    %18 = vector.broadcast %5 : vector<1x16xf32> to vector<128x16xf32>
    %19 = arith.addf %17, %18 : vector<128x16xf32>
    %20 = math.tanh %19 : vector<128x16xf32>
    %21 = arith.truncf %20 : vector<128x16xf32> to vector<128x16xbf16>
    %cst_14 = arith.constant dense<0.000000e+00> : vector<128x16xf32>
    %22 = tpu.matmul %21, %2, %cst_14 {dimension_numbers = #tpu.dot_dimension_numbers<[1], [0], [0], [1], [0, 0, 1, 1], [], []>} : vector<128x16xbf16>, vector<16x16xbf16>, vector<128x16xf32> -> vector<128x16xf32>
    %23 = vector.broadcast %6 : vector<1x16xf32> to vector<128x16xf32>
    %24 = arith.addf %22, %23 : vector<128x16xf32>
    %25 = math.tanh %24 : vector<128x16xf32>
    %26 = arith.truncf %25 : vector<128x16xf32> to vector<128x16xbf16>
    %cst_15 = arith.constant dense<0.000000e+00> : vector<128x8xf32>
    %27 = tpu.matmul %26, %3, %cst_15 {dimension_numbers = #tpu.dot_dimension_numbers<[1], [0], [0], [1], [0, 0, 1, 1], [], []>} : vector<128x16xbf16>, vector<16x8xbf16>, vector<128x8xf32> -> vector<128x8xf32>
    %28 = vector.broadcast %7 : vector<1x8xf32> to vector<128x8xf32>
    %29 = arith.addf %27, %28 : vector<128x8xf32>
    %30 = math.tanh %29 : vector<128x8xf32>
    %31 = vector.broadcast %9 : vector<1x8xf32> to vector<128x8xf32>
    %32 = arith.mulf %30, %31 : vector<128x8xf32>
    %cst_16 = arith.constant dense<0.000000e+00> : vector<128xf32>
    %33 = vector.multi_reduction <add>, %32, %cst_16 [1] : vector<128x8xf32> to vector<128xf32>
    %34 = vector.shape_cast %33 : vector<128xf32> to vector<128x1xf32>
    %35 = vector.broadcast %8 : vector<1x1xf32> to vector<128x1xf32>
    %36 = arith.addf %34, %35 : vector<128x1xf32>
    %cst_17 = arith.constant 5.000000e-01 : f32
    %37 = vector.broadcast %cst_17 : f32 to vector<128x1xf32>
    %38 = arith.mulf %37, %36 : vector<128x1xf32>
    %39 = math.tanh %38 : vector<128x1xf32>
    %cst_18 = arith.constant 1.000000e+00 : f32
    %40 = vector.broadcast %cst_18 : f32 to vector<128x1xf32>
    %41 = arith.addf %40, %39 : vector<128x1xf32>
    %cst_19 = arith.constant 5.000000e-01 : f32
    %42 = vector.broadcast %cst_19 : f32 to vector<128x1xf32>
    %43 = arith.mulf %42, %41 : vector<128x1xf32>
    %c0_20 = arith.constant 0 : index
    %c0_21 = arith.constant 0 : index
    %44 = vector.load %arg4[%c0_20, %c0_21] : memref<128x1xf32, #tpu.memory_space<vmem>>, vector<128x1xf32>
    tpu.vector_store %arg4[%c0_20, %c0_21], %43 {strides = array<i32>} : memref<128x1xf32, #tpu.memory_space<vmem>>, vector<128x1xf32>,
    return
  }
  func.func @transform_0(%arg0: i32) -> (i32, i32) {
    %c0_i32 = arith.constant 0 : i32
    %c0_i32_0 = arith.constant 0 : i32
    return %arg0, %c0_i32 : i32, i32
  }
  func.func @transform_1(%arg0: i32) -> (i32, i32) {
    %c0_i32 = arith.constant 0 : i32
    %c0_i32_0 = arith.constant 0 : i32
    %c0_i32_1 = arith.constant 0 : i32
    return %c0_i32, %c0_i32_0 : i32, i32
  }
  func.func @transform_2(%arg0: i32) -> (i32, i32) {
    %c0_i32 = arith.constant 0 : i32
    %c0_i32_0 = arith.constant 0 : i32
    %c0_i32_1 = arith.constant 0 : i32
    return %c0_i32, %c0_i32_0 : i32, i32
  }
  func.func @transform_3(%arg0: i32) -> (i32, i32) {
    %c0_i32 = arith.constant 0 : i32
    %c0_i32_0 = arith.constant 0 : i32
    return %arg0, %c0_i32 : i32, i32
  }
}

</mosaic_0001>

<llo_original>
// kernel: net_forward.1
$region0: #{net_forward.1}
  #allocation0 [shape = 'u32[]', space=smem, size = 0x4, offset = 0x4, fixed_abs, tag = 'smem constant byte address 0x4 - core index']
  #allocation1 [shape = 'u32[72,128]{1,0:T(1,128)}', space=vmem, size = 0x9000, scoped, tag = 'internal scratch']
  %s0 = inlined_call_operand.vmem [shape: f32[256,16], index: 0, kind: input, shape index: {}]
  %s1 = inlined_call_operand.vmem [shape: bf16[80,32], index: 1, kind: input, shape index: {}]
  %s2 = inlined_call_operand.vmem [shape: f32[6,32], index: 2, kind: input, shape index: {}]
  %s3 = inlined_call_operand.vmem [shape: f32[256,1], index: 3, kind: output, shape index: {}]
  %s4 = sld [smem:[#allocation0]]
  $region45: #{net_forward.1} parent=0
    _
  %s6 = ssub.s32 1, %s4
  %s7 = scalar_select 0, %s6, %s4
  loop: start=0, step=1, limit=4
  $region2: #{net_forward.1} parent=0 // loop_pre_header
    _
  $region3: #{net_forward.1} parent=0 // loop_header
    %s9 = sphi 0, %s13
    %p10 = scmp.ge.s32.totalorder %s9, 4
    %s19 = sphi 0, %s21
    %s22 = sphi 0, %s19
    %s23 = sphi 0, %s22
    %s39 = sphi 0, %s23
    %s43 = sphi 0, %s43
    %s45 = sphi 0, %s43
    %s46 = sphi 0, %s45
    %s60 = sphi 0, %s46
    %s64 = sphi 0, %s64
    %s66 = sphi 0, %s64
    %s67 = sphi 0, %s66
    %s81 = sphi 0, %s67
    %s87 = sphi 0, %s89
    %s90 = sphi 0, %s87
    %s91 = sphi 0, %s90
    %s107 = sphi 0, %s91
  $region4: #{net_forward.1} parent=0 // loop_header_branch
    %12 = sbr.rel (%p10) target = $region8
  $region5: #{net_forward.1} parent=0 // loop_body
    %s14 = ssub.s32 %s9, 1
    %s15 = ssub.s32 %s9, 2
    %s16 = sadd.s32 %s9, 1
    %s17 = ssub.s32 %s9, %s16
    %p18 = scmp.eq.s32.totalorder %s17, 0
    %s20 = sadd.s32 %s19, 1
    %s21 = scalar_select %p18, %s19, %s20
    %p24 = pneg %p18
    %p25 = scmp.eq.s32.totalorder %s9, 1
    %p26 = por %p24, %p25
    %p27 = scmp.ne.s32.totalorder %s19, %s22
    %p28 = scmp.eq.s32.totalorder %s9, 0
    %p29 = por %p27, %p28
    %p30 = scmp.ne.s32.totalorder %s19, %s22
    %p31 = scmp.eq.s32.totalorder %s14, 1
    %p32 = por %p30, %p31
    %p33 = scmp.ne.s32.totalorder %s22, %s23
    %p34 = scmp.eq.s32.totalorder %s14, 0
    %p35 = por %p33, %p34
    %p36 = scmp.ne.s32.totalorder %s22, %s23
    %p37 = scmp.eq.s32.totalorder %s15, 1
    %p38 = por %p36, %p37
    %p40 = scmp.ne.s32.totalorder %s23, %s39
    %p41 = scmp.eq.s32.totalorder %s15, 0
    %p42 = por %p40, %p41
    %s44 = sadd.s32 %s43, 1
    %p47 = scmp.eq.s32.totalorder %s9, 1
    %p48 = scmp.ne.s32.totalorder %s43, %s45
    %p49 = scmp.eq.s32.totalorder %s9, 0
    %p50 = por %p48, %p49
    %p51 = scmp.ne.s32.totalorder %s43, %s45
    %p52 = scmp.eq.s32.totalorder %s14, 1
    %p53 = por %p51, %p52
    %p54 = scmp.ne.s32.totalorder %s45, %s46
    %p55 = scmp.eq.s32.totalorder %s14, 0
    %p56 = por %p54, %p55
    %p57 = scmp.ne.s32.totalorder %s45, %s46
    %p58 = scmp.eq.s32.totalorder %s15, 1
    %p59 = por %p57, %p58
    %p61 = scmp.ne.s32.totalorder %s46, %s60
    %p62 = scmp.eq.s32.totalorder %s15, 0
    %p63 = por %p61, %p62
    %s65 = sadd.s32 %s64, 1
    %p68 = scmp.eq.s32.totalorder %s9, 1
    %p69 = scmp.ne.s32.totalorder %s64, %s66
    %p70 = scmp.eq.s32.totalorder %s9, 0
    %p71 = por %p69, %p70
    %p72 = scmp.ne.s32.totalorder %s64, %s66
    %p73 = scmp.eq.s32.totalorder %s14, 1
    %p74 = por %p72, %p73
    %p75 = scmp.ne.s32.totalorder %s66, %s67
    %p76 = scmp.eq.s32.totalorder %s14, 0
    %p77 = por %p75, %p76
    %p78 = scmp.ne.s32.totalorder %s66, %s67
    %p79 = scmp.eq.s32.totalorder %s15, 1
    %p80 = por %p78, %p79
    %p82 = scmp.ne.s32.totalorder %s67, %s81
    %p83 = scmp.eq.s32.totalorder %s15, 0
    %p84 = por %p82, %p83
    %s85 = ssub.s32 %s9, %s16
    %p86 = scmp.eq.s32.totalorder %s85, 0
    %s88 = sadd.s32 %s87, 1
    %s89 = scalar_select %p86, %s87, %s88
    %p92 = pneg %p86
    %p93 = scmp.eq.s32.totalorder %s9, 1
    %p94 = por %p92, %p93
    %p95 = scmp.ne.s32.totalorder %s87, %s90
    %p96 = scmp.eq.s32.totalorder %s9, 0
    %p97 = por %p95, %p96
    %p98 = scmp.ne.s32.totalorder %s87, %s90
    %p99 = scmp.eq.s32.totalorder %s14, 1
    %p100 = por %p98, %p99
    %p101 = scmp.ne.s32.totalorder %s90, %s91
    %p102 = scmp.eq.s32.totalorder %s14, 0
    %p103 = por %p101, %p102
    %p104 = scmp.ne.s32.totalorder %s90, %s91
    %p105 = scmp.eq.s32.totalorder %s15, 1
    %p106 = por %p104, %p105
    %p108 = scmp.ne.s32.totalorder %s91, %s107
    %p109 = scmp.eq.s32.totalorder %s15, 0
    %p110 = por %p108, %p109
    %p111 = scmp.le.s32.totalorder 1, %s9
    %p112 = scmp.lt.s32.totalorder %s9, 3
    %p113 = pnand %p111, %p112
    %p114 = pneg %p113
    // Predicated region
    $region9: #{net_forward.1} parent=5 // pred_check
      _
    $region10: #{net_forward.1} parent=5 // pred_check_branch
      %116 = sbr.rel (%p113) target = $region12
    $region11: #{net_forward.1} parent=5 // pred_region
      %s117 = ssub.s32 %s9, 1
      // Predicated region
      $region13: #{net_forward.1} parent=11 // pred_check
        %p118 = pneg %p56
      $region14: #{net_forward.1} parent=11 // pred_check_branch
        %120 = sbr.rel (%p118) target = $region16
      $region15: #{net_forward.1} parent=11 // pred_region
        _
      $region16: #{net_forward.1} parent=11 // pred_fallthru
        _
      // Predicated region
      $region17: #{net_forward.1} parent=11 // pred_check
        %p121 = pneg %p77
      $region18: #{net_forward.1} parent=11 // pred_check_branch
        %123 = sbr.rel (%p121) target = $region20
      $region19: #{net_forward.1} parent=11 // pred_region
        _
      $region20: #{net_forward.1} parent=11 // pred_fallthru
        _
    $region12: #{net_forward.1} parent=5 // pred_fallthru
      _
    %p124 = scmp.lt.s32.totalorder %s9, 2
    // Predicated region
    $region21: #{net_forward.1} parent=5 // pred_check
      %p125 = pneg %p124
    $region22: #{net_forward.1} parent=5 // pred_check_branch
      %127 = sbr.rel (%p125) target = $region24
    $region23: #{net_forward.1} parent=5 // pred_region
      // Predicated region
      $region25: #{net_forward.1} parent=23 // pred_check
        %p128 = pneg %p29
      $region26: #{net_forward.1} parent=23 // pred_check_branch
        %130 = sbr.rel (%p128) target = $region28
      $region27: #{net_forward.1} parent=23 // pred_region
        %s131 = smul.u32 16, %s9
        %p132 = scmp.lt.s32.totalorder %s131, 31
        %s133 = scalar_select %p132, %s131, 31
        %s134 = smul.addr %s133, 8
        %s135 = scalar_lea.vmem %s0, %s134
        %s136 = smul.u32 16, %s9
      $region28: #{net_forward.1} parent=23 // pred_fallthru
        _
    $region24: #{net_forward.1} parent=5 // pred_fallthru
      _
    %p137 = scmp.le.s32.totalorder 1, %s9
    %p138 = scmp.lt.s32.totalorder %s9, 3
    %p139 = pnand %p137, %p138
    %p140 = pneg %p139
    // Predicated region
    $region29: #{net_forward.1} parent=5 // pred_check
      _
    $region30: #{net_forward.1} parent=5 // pred_check_branch
      %142 = sbr.rel (%p139) target = $region32
    $region31: #{net_forward.1} parent=5 // pred_region
      %s143 = ssub.s32 %s9, 1
      %s144 = smul.u32 16, %s14
      %p145 = scmp.lt.s32.totalorder %s144, 31
      %s146 = scalar_select %p145, %s144, 31
      %s147 = smul.addr %s146, 8
      %s148 = scalar_lea.vmem %s0, %s147
      %p149 = pneg %p35
      %p150 = pneg %p32
      %p151 = pneg %p56
      %p152 = pneg %p53
      %p153 = pneg %p77
      %p154 = pneg %p74
      %p155 = pneg %p103
      %p156 = pneg %p100
      %s157 = smul.u32 16, %s14
      %p158 = scmp.lt.s32.totalorder %s157, 31
      %s159 = scalar_select %p158, %s157, 31
      %s160 = smul.addr %s159, 8
      %s161 = scalar_lea.vmem %s3, %s160
      %s162 = smul.u32 16, %s14
      %p163 = scmp.lt.s32.totalorder %s162, 31
      %s164 = scalar_select %p163, %s162, 31
      %s165 = smul.addr %s164, 8
      %s166 = scalar_lea.vmem %s0, %s165
      %s167 = smul.u32 16, %s14
      %s168 = smul.u32 16, %s14
      %p169 = scmp.lt.s32.totalorder %s168, 31
      %s170 = scalar_select %p169, %s168, 31
      %s171 = smul.addr %s170, 8
      %s172 = scalar_lea.vmem %s3, %s171
      %s173 = smul.u32 16, %s14
      %v175 = vld [vmem:[%s1] sm:$0xf]
      %v176 = vld [vmem:[%s1 + $0x4] sm:$0xf]
      %v177 = vld [vmem:[%s1 + $0x8] sm:$0xf]
      %v178 = vld [vmem:[%s1 + $0xc] sm:$0xf]
      %v179 = vld [vmem:[%s1 + $0x10] sm:$0xf]
      %v180 = vld [vmem:[%s1 + $0x14] sm:$0xf]
      %v181 = vld [vmem:[%s1 + $0x18] sm:$0xf]
      %v182 = vld [vmem:[%s1 + $0x1c] sm:$0xf]
      %v183 = vld [vmem:[%s1 + $0x20] sm:$0xf]
      %v184 = vld [vmem:[%s1 + $0x24] sm:$0xf]
      %v185 = vld [vmem:[%s2] sm:$0x1]
      %v186 = vld [vmem:[%s2 + $0x1] sm:$0x1]
      %v187 = vld [vmem:[%s2 + $0x2] sm:$0x1]
      %v188 = vld [vmem:[%s2 + $0x3] sm:$0x1]
      %v189 = vld [vmem:[%s2 + $0x4] sm:$0x1]
      %v190 = vld [vmem:[%s2 + $0x5] sm:$0x1]
      %v191 = vld [vmem:[%s166] sm:$0xff]
      %v192 = vld [vmem:[%s166 + $0x8] sm:$0xff]
      %v193 = vld [vmem:[%s166 + $0x10] sm:$0xff]
      %v194 = vld [vmem:[%s166 + $0x18] sm:$0xff]
      %v195 = vld [vmem:[%s166 + $0x20] sm:$0xff]
      %v196 = vld [vmem:[%s166 + $0x28] sm:$0xff]
      %v197 = vld [vmem:[%s166 + $0x30] sm:$0xff]
      %v198 = vld [vmem:[%s166 + $0x38] sm:$0xff]
      %v199 = vld [vmem:[%s166 + $0x40] sm:$0xff]
      %v200 = vld [vmem:[%s166 + $0x48] sm:$0xff]
      %v201 = vld [vmem:[%s166 + $0x50] sm:$0xff]
      %v202 = vld [vmem:[%s166 + $0x58] sm:$0xff]
      %v203 = vld [vmem:[%s166 + $0x60] sm:$0xff]
      %v204 = vld [vmem:[%s166 + $0x68] sm:$0xff]
      %v205 = vld [vmem:[%s166 + $0x70] sm:$0xff]
      %v206 = vld [vmem:[%s166 + $0x78] sm:$0xff]
      %v207 = vpack.c.bf16 %v192, %v191
      %v208 = vpack.c.bf16 %v194, %v193
      %v209 = vpack.c.bf16 %v196, %v195
      %v210 = vpack.c.bf16 %v198, %v197
      %v211 = vpack.c.bf16 %v200, %v199
      %v212 = vpack.c.bf16 %v202, %v201
      %v213 = vpack.c.bf16 %v204, %v203
      %v214 = vpack.c.bf16 %v206, %v205
      %v215 = vperm.slane %v185, 0
      %v218 = vunpack.c.l.b16 %v175
      %v219 = vunpack.c.l.b16 %v176
      %v220 = vpack.c.b16 %v219, %v218
      %vm222 = vcmask 130048
      %v224 = vsel %vm222, %v207, 0
      %v227 = vsel %vm222, %v208, 0
      %v230 = vsel %vm222, %v209, 0
      %v233 = vsel %vm222, %v210, 0
      %v236 = vsel %vm222, %v211, 0
      %v239 = vsel %vm222, %v212, 0
      %v242 = vsel %vm222, %v213, 0
      %v245 = vsel %vm222, %v214, 0
      %247 = vmatpush.bf16.msra.mxu0 0
      %248 = vmatpush.bf16.msra.mxu0 0
      %249 = vmatpush.bf16.msra.mxu0 0
      %250 = vmatpush.bf16.msra.mxu0 0
      %251 = vmatpush.bf16.msra.mxu0 0
      %252 = vmatpush.bf16.msra.mxu0 0
      %253 = vmatpush.bf16.msra.mxu0 0
      %254 = vmatpush.bf16.msra.mxu0 %v220
      %255 = vmatmul.bf16.gmra.mxu0 %v224
      %v256 = vpop.f32.mrf.mxu0
      %v257 = vadd.f32 %v215, %v256
      %v258 = vpop.f32.mrf.mxu0
      %v259 = vadd.f32 %v215, %v258
      %260 = vmatmul.bf16.gmra.mxu0 %v227
      %v261 = vpop.f32.mrf.mxu0
      %v262 = vadd.f32 %v215, %v261
      %v263 = vpop.f32.mrf.mxu0
      %v264 = vadd.f32 %v215, %v263
      %265 = vmatmul.bf16.gmra.mxu0 %v230
      %v266 = vpop.f32.mrf.mxu0
      %v267 = vadd.f32 %v215, %v266
      %v268 = vpop.f32.mrf.mxu0
      %v269 = vadd.f32 %v215, %v268
      %270 = vmatmul.bf16.gmra.mxu0 %v233
      %v271 = vpop.f32.mrf.mxu0
      %v272 = vadd.f32 %v215, %v271
      %v273 = vpop.f32.mrf.mxu0
      %v274 = vadd.f32 %v215, %v273
      %275 = vmatmul.bf16.gmra.mxu0 %v236
      %v276 = vpop.f32.mrf.mxu0
      %v277 = vadd.f32 %v215, %v276
      %v278 = vpop.f32.mrf.mxu0
      %v279 = vadd.f32 %v215, %v278
      %280 = vmatmul.bf16.gmra.mxu0 %v239
      %v281 = vpop.f32.mrf.mxu0
      %v282 = vadd.f32 %v215, %v281
      %v283 = vpop.f32.mrf.mxu0
      %v284 = vadd.f32 %v215, %v283
      %285 = vmatmul.bf16.gmra.mxu0 %v242
      %v286 = vpop.f32.mrf.mxu0
      %v287 = vadd.f32 %v215, %v286
      %v288 = vpop.f32.mrf.mxu0
      %v289 = vadd.f32 %v215, %v288
      %290 = vmatmul.bf16.gmra.mxu0 %v245
      %v291 = vpop.f32.mrf.mxu0
      %v292 = vadd.f32 %v215, %v291
      %v293 = vpop.f32.mrf.mxu0
      %v294 = vadd.f32 %v215, %v293
      %295 = vdwg.mxu0
      %v296 = vtanh.pop %v257
      %v297 = vtanh.pop %v259
      %v298 = vtanh.pop %v262
      %v299 = vtanh.pop %v264
      %v300 = vtanh.pop %v267
      %v301 = vtanh.pop %v269
      %v302 = vtanh.pop %v272
      %v303 = vtanh.pop %v274
      %v304 = vtanh.pop %v277
      %v305 = vtanh.pop %v279
      %v306 = vtanh.pop %v282
      %v307 = vtanh.pop %v284
      %v308 = vtanh.pop %v287
      %v309 = vtanh.pop %v289
      %v310 = vtanh.pop %v292
      %v311 = vtanh.pop %v294
      %v312 = vpack.c.bf16 %v297, %v296
      %v313 = vpack.c.bf16 %v299, %v298
      %v314 = vpack.c.bf16 %v301, %v300
      %v315 = vpack.c.bf16 %v303, %v302
      %v316 = vpack.c.bf16 %v305, %v304
      %v317 = vpack.c.bf16 %v307, %v306
      %v318 = vpack.c.bf16 %v309, %v308
      %v319 = vpack.c.bf16 %v311, %v310
      %v320 = vperm.slane %v186, 0
      %v325 = vunpack.c.l.b16 %v177
      %v326 = vunpack.c.l.b16 %v178
      %v327 = vunpack.c.l.b16 %v179
      %v328 = vunpack.c.l.b16 %v180
      %v329 = vpack.c.b16 %v326, %v325
      %v330 = vpack.c.b16 %v328, %v327
      %vm333 = vcmask 261120
      %v335 = vsel %vm333, %v312, 0
      %v338 = vsel %vm333, %v313, 0
      %v341 = vsel %vm333, %v314, 0
      %v344 = vsel %vm333, %v315, 0
      %v347 = vsel %vm333, %v316, 0
      %v350 = vsel %vm333, %v317, 0
      %v353 = vsel %vm333, %v318, 0
      %v356 = vsel %vm333, %v319, 0
      %358 = vmatpush.bf16.msra.mxu0 0
      %359 = vmatpush.bf16.msra.mxu0 0
      %360 = vmatpush.bf16.msra.mxu0 0
      %361 = vmatpush.bf16.msra.mxu0 0
      %362 = vmatpush.bf16.msra.mxu0 0
      %363 = vmatpush.bf16.msra.mxu0 0
      %364 = vmatpush.bf16.msra.mxu0 %v330
      %365 = vmatpush.bf16.msra.mxu0 %v329
      %366 = vmatmul.bf16.gmra.mxu0 %v335
      %v367 = vpop.f32.mrf.mxu0
      %v368 = vadd.f32 %v320, %v367
      %v369 = vpop.f32.mrf.mxu0
      %v370 = vadd.f32 %v320, %v369
      %371 = vmatmul.bf16.gmra.mxu0 %v338
      %v372 = vpop.f32.mrf.mxu0
      %v373 = vadd.f32 %v320, %v372
      %v374 = vpop.f32.mrf.mxu0
      %v375 = vadd.f32 %v320, %v374
      %376 = vmatmul.bf16.gmra.mxu0 %v341
      %v377 = vpop.f32.mrf.mxu0
      %v378 = vadd.f32 %v320, %v377
      %v379 = vpop.f32.mrf.mxu0
      %v380 = vadd.f32 %v320, %v379
      %381 = vmatmul.bf16.gmra.mxu0 %v344
      %v382 = vpop.f32.mrf.mxu0
      %v383 = vadd.f32 %v320, %v382
      %v384 = vpop.f32.mrf.mxu0
      %v385 = vadd.f32 %v320, %v384
      %386 = vmatmul.bf16.gmra.mxu0 %v347
      %v387 = vpop.f32.mrf.mxu0
      %v388 = vadd.f32 %v320, %v387
      %v389 = vpop.f32.mrf.mxu0
      %v390 = vadd.f32 %v320, %v389
      %391 = vmatmul.bf16.gmra.mxu0 %v350
      %v392 = vpop.f32.mrf.mxu0
      %v393 = vadd.f32 %v320, %v392
      %v394 = vpop.f32.mrf.mxu0
      %v395 = vadd.f32 %v320, %v394
      %396 = vmatmul.bf16.gmra.mxu0 %v353
      %v397 = vpop.f32.mrf.mxu0
      %v398 = vadd.f32 %v320, %v397
      %v399 = vpop.f32.mrf.mxu0
      %v400 = vadd.f32 %v320, %v399
      %401 = vmatmul.bf16.gmra.mxu0 %v356
      %v402 = vpop.f32.mrf.mxu0
      %v403 = vadd.f32 %v320, %v402
      %v404 = vpop.f32.mrf.mxu0
      %v405 = vadd.f32 %v320, %v404
      %406 = vdwg.mxu0
      %v407 = vtanh.pop %v368
      %v408 = vtanh.pop %v370
      %v409 = vtanh.pop %v373
      %v410 = vtanh.pop %v375
      %v411 = vtanh.pop %v378
      %v412 = vtanh.pop %v380
      %v413 = vtanh.pop %v383
      %v414 = vtanh.pop %v385
      %v415 = vtanh.pop %v388
      %v416 = vtanh.pop %v390
      %v417 = vtanh.pop %v393
      %v418 = vtanh.pop %v395
      %v419 = vtanh.pop %v398
      %v420 = vtanh.pop %v400
      %v421 = vtanh.pop %v403
      %v422 = vtanh.pop %v405
      %v423 = vpack.c.bf16 %v408, %v407
      %v424 = vpack.c.bf16 %v410, %v409
      %v425 = vpack.c.bf16 %v412, %v411
      %v426 = vpack.c.bf16 %v414, %v413
      %v427 = vpack.c.bf16 %v416, %v415
      %v428 = vpack.c.bf16 %v418, %v417
      %v429 = vpack.c.bf16 %v420, %v419
      %v430 = vpack.c.bf16 %v422, %v421
      %v431 = vperm.slane %v187, 0
      %v434 = vunpack.c.l.b16 %v181
      %v435 = vunpack.c.l.b16 %v182
      %v436 = vpack.c.b16 %v435, %v434
      %v439 = vsel %vm222, %v423, 0
      %v442 = vsel %vm222, %v424, 0
      %v445 = vsel %vm222, %v425, 0
      %v448 = vsel %vm222, %v426, 0
      %v451 = vsel %vm222, %v427, 0
      %v454 = vsel %vm222, %v428, 0
      %v457 = vsel %vm222, %v429, 0
      %v460 = vsel %vm222, %v430, 0
      %462 = vmatpush.bf16.msra.mxu0 0
      %463 = vmatpush.bf16.msra.mxu0 0
      %464 = vmatpush.bf16.msra.mxu0 0
      %465 = vmatpush.bf16.msra.mxu0 0
      %466 = vmatpush.bf16.msra.mxu0 0
      %467 = vmatpush.bf16.msra.mxu0 0
      %468 = vmatpush.bf16.msra.mxu0 0
      %469 = vmatpush.bf16.msra.mxu0 %v436
      %470 = vmatmul.bf16.gmra.mxu0 %v439
      %v471 = vpop.f32.mrf.mxu0
      %v472 = vadd.f32 %v431, %v471
      %v473 = vpop.f32.mrf.mxu0
      %v474 = vadd.f32 %v431, %v473
      %475 = vmatmul.bf16.gmra.mxu0 %v442
      %v476 = vpop.f32.mrf.mxu0
      %v477 = vadd.f32 %v431, %v476
      %v478 = vpop.f32.mrf.mxu0
      %v479 = vadd.f32 %v431, %v478
      %480 = vmatmul.bf16.gmra.mxu0 %v445
      %v481 = vpop.f32.mrf.mxu0
      %v482 = vadd.f32 %v431, %v481
      %v483 = vpop.f32.mrf.mxu0
      %v484 = vadd.f32 %v431, %v483
      %485 = vmatmul.bf16.gmra.mxu0 %v448
      %v486 = vpop.f32.mrf.mxu0
      %v487 = vadd.f32 %v431, %v486
      %v488 = vpop.f32.mrf.mxu0
      %v489 = vadd.f32 %v431, %v488
      %490 = vmatmul.bf16.gmra.mxu0 %v451
      %v491 = vpop.f32.mrf.mxu0
      %v492 = vadd.f32 %v431, %v491
      %v493 = vpop.f32.mrf.mxu0
      %v494 = vadd.f32 %v431, %v493
      %495 = vmatmul.bf16.gmra.mxu0 %v454
      %v496 = vpop.f32.mrf.mxu0
      %v497 = vadd.f32 %v431, %v496
      %v498 = vpop.f32.mrf.mxu0
      %v499 = vadd.f32 %v431, %v498
      %500 = vmatmul.bf16.gmra.mxu0 %v457
      %v501 = vpop.f32.mrf.mxu0
      %v502 = vadd.f32 %v431, %v501
      %v503 = vpop.f32.mrf.mxu0
      %v504 = vadd.f32 %v431, %v503
      %505 = vmatmul.bf16.gmra.mxu0 %v460
      %v506 = vpop.f32.mrf.mxu0
      %v507 = vadd.f32 %v431, %v506
      %v508 = vpop.f32.mrf.mxu0
      %v509 = vadd.f32 %v431, %v508
      %510 = vdwg.mxu0
      %v511 = vtanh.pop %v472
      %v512 = vtanh.pop %v474
      %v513 = vtanh.pop %v477
      %v514 = vtanh.pop %v479
      %v515 = vtanh.pop %v482
      %v516 = vtanh.pop %v484
      %v517 = vtanh.pop %v487
      %v518 = vtanh.pop %v489
      %v519 = vtanh.pop %v492
      %v520 = vtanh.pop %v494
      %v521 = vtanh.pop %v497
      %v522 = vtanh.pop %v499
      %v523 = vtanh.pop %v502
      %v524 = vtanh.pop %v504
      %v525 = vtanh.pop %v507
      %v526 = vtanh.pop %v509
      %v527 = vpack.c.bf16 %v512, %v511
      %v528 = vpack.c.bf16 %v514, %v513
      %v529 = vpack.c.bf16 %v516, %v515
      %v530 = vpack.c.bf16 %v518, %v517
      %v531 = vpack.c.bf16 %v520, %v519
      %v532 = vpack.c.bf16 %v522, %v521
      %v533 = vpack.c.bf16 %v524, %v523
      %v534 = vpack.c.bf16 %v526, %v525
      %v535 = vperm.slane %v188, 0
      %v538 = vunpack.c.l.b16 %v183
      %v539 = vunpack.c.l.b16 %v184
      %v540 = vpack.c.b16 %v539, %v538
      %v543 = vsel %vm222, %v527, 0
      %v546 = vsel %vm222, %v528, 0
      %v549 = vsel %vm222, %v529, 0
      %v552 = vsel %vm222, %v530, 0
      %v555 = vsel %vm222, %v531, 0
      %v558 = vsel %vm222, %v532, 0
      %v561 = vsel %vm222, %v533, 0
      %v564 = vsel %vm222, %v534, 0
      %566 = vmatpush.bf16.msra.mxu0 0
      %567 = vmatpush.bf16.msra.mxu0 0
      %568 = vmatpush.bf16.msra.mxu0 0
      %569 = vmatpush.bf16.msra.mxu0 0
      %570 = vmatpush.bf16.msra.mxu0 0
      %571 = vmatpush.bf16.msra.mxu0 0
      %572 = vmatpush.bf16.msra.mxu0 0
      %573 = vmatpush.bf16.msra.mxu0 %v540
      %574 = vmatmul.bf16.gmra.mxu0 %v543
      %v575 = vpop.f32.mrf.mxu0
      %v576 = vadd.f32 %v535, %v575
      %v577 = vpop.f32.mrf.mxu0
      %v578 = vadd.f32 %v535, %v577
      %579 = vmatmul.bf16.gmra.mxu0 %v546
      %v580 = vpop.f32.mrf.mxu0
      %v581 = vadd.f32 %v535, %v580
      %v582 = vpop.f32.mrf.mxu0
      %v583 = vadd.f32 %v535, %v582
      %584 = vmatmul.bf16.gmra.mxu0 %v549
      %v585 = vpop.f32.mrf.mxu0
      %v586 = vadd.f32 %v535, %v585
      %v587 = vpop.f32.mrf.mxu0
      %v588 = vadd.f32 %v535, %v587
      %589 = vmatmul.bf16.gmra.mxu0 %v552
      %v590 = vpop.f32.mrf.mxu0
      %v591 = vadd.f32 %v535, %v590
      %v592 = vpop.f32.mrf.mxu0
      %v593 = vadd.f32 %v535, %v592
      %594 = vmatmul.bf16.gmra.mxu0 %v555
      %v595 = vpop.f32.mrf.mxu0
      %v596 = vadd.f32 %v535, %v595
      %v597 = vpop.f32.mrf.mxu0
      %v598 = vadd.f32 %v535, %v597
      %599 = vmatmul.bf16.gmra.mxu0 %v558
      %v600 = vpop.f32.mrf.mxu0
      %v601 = vadd.f32 %v535, %v600
      %v602 = vpop.f32.mrf.mxu0
      %v603 = vadd.f32 %v535, %v602
      %604 = vmatmul.bf16.gmra.mxu0 %v561
      %v605 = vpop.f32.mrf.mxu0
      %v606 = vadd.f32 %v535, %v605
      %v607 = vpop.f32.mrf.mxu0
      %v608 = vadd.f32 %v535, %v607
      %609 = vmatmul.bf16.gmra.mxu0 %v564
      %v610 = vpop.f32.mrf.mxu0
      %v611 = vadd.f32 %v535, %v610
      %v612 = vpop.f32.mrf.mxu0
      %v613 = vadd.f32 %v535, %v612
      %614 = vdwg.mxu0
      %v615 = vtanh.pop %v576
      %v616 = vtanh.pop %v578
      %v617 = vtanh.pop %v581
      %v618 = vtanh.pop %v583
      %v619 = vtanh.pop %v586
      %v620 = vtanh.pop %v588
      %v621 = vtanh.pop %v591
      %v622 = vtanh.pop %v593
      %v623 = vtanh.pop %v596
      %v624 = vtanh.pop %v598
      %v625 = vtanh.pop %v601
      %v626 = vtanh.pop %v603
      %v627 = vtanh.pop %v606
      %v628 = vtanh.pop %v608
      %v629 = vtanh.pop %v611
      %v630 = vtanh.pop %v613
      %v631 = vperm.slane %v190, 0
      %v632 = vmul.f32 %v615, %v631
      %v633 = vmul.f32 %v616, %v631
      %v634 = vmul.f32 %v617, %v631
      %v635 = vmul.f32 %v618, %v631
      %v636 = vmul.f32 %v619, %v631
      %v637 = vmul.f32 %v620, %v631
      %v638 = vmul.f32 %v621, %v631
      %v639 = vmul.f32 %v622, %v631
      %v640 = vmul.f32 %v623, %v631
      %v641 = vmul.f32 %v624, %v631
      %v642 = vmul.f32 %v625, %v631
      %v643 = vmul.f32 %v626, %v631
      %v644 = vmul.f32 %v627, %v631
      %v645 = vmul.f32 %v628, %v631
      %v646 = vmul.f32 %v629, %v631
      %v647 = vmul.f32 %v630, %v631
      %vm648 = vcmask 64512
      %v649 = vsel %vm648, %v632, 0.0
      %650 = vadd.xlane.f32.xlu0 %v649
      %v651 = vpop.xlane.xlu0 %650
      %v652 = vsel %vm648, %v633, 0.0
      %653 = vadd.xlane.f32.xlu0 %v652
      %v654 = vpop.xlane.xlu0 %653
      %v655 = vsel %vm648, %v634, 0.0
      %656 = vadd.xlane.f32.xlu0 %v655
      %v657 = vpop.xlane.xlu0 %656
      %v658 = vsel %vm648, %v635, 0.0
      %659 = vadd.xlane.f32.xlu0 %v658
      %v660 = vpop.xlane.xlu0 %659
      %v661 = vsel %vm648, %v636, 0.0
      %662 = vadd.xlane.f32.xlu0 %v661
      %v663 = vpop.xlane.xlu0 %662
      %v664 = vsel %vm648, %v637, 0.0
      %665 = vadd.xlane.f32.xlu0 %v664
      %v666 = vpop.xlane.xlu0 %665
      %v667 = vsel %vm648, %v638, 0.0
      %668 = vadd.xlane.f32.xlu0 %v667
      %v669 = vpop.xlane.xlu0 %668
      %v670 = vsel %vm648, %v639, 0.0
      %671 = vadd.xlane.f32.xlu0 %v670
      %v672 = vpop.xlane.xlu0 %671
      %v673 = vsel %vm648, %v640, 0.0
      %674 = vadd.xlane.f32.xlu0 %v673
      %v675 = vpop.xlane.xlu0 %674
      %v676 = vsel %vm648, %v641, 0.0
      %677 = vadd.xlane.f32.xlu0 %v676
      %v678 = vpop.xlane.xlu0 %677
      %v679 = vsel %vm648, %v642, 0.0
      %680 = vadd.xlane.f32.xlu0 %v679
      %v681 = vpop.xlane.xlu0 %680
      %v682 = vsel %vm648, %v643, 0.0
      %683 = vadd.xlane.f32.xlu0 %v682
      %v684 = vpop.xlane.xlu0 %683
      %v685 = vsel %vm648, %v644, 0.0
      %686 = vadd.xlane.f32.xlu0 %v685
      %v687 = vpop.xlane.xlu0 %686
      %v688 = vsel %vm648, %v645, 0.0
      %689 = vadd.xlane.f32.xlu0 %v688
      %v690 = vpop.xlane.xlu0 %689
      %v691 = vsel %vm648, %v646, 0.0
      %692 = vadd.xlane.f32.xlu0 %v691
      %v693 = vpop.xlane.xlu0 %692
      %v694 = vsel %vm648, %v647, 0.0
      %695 = vadd.xlane.f32.xlu0 %v694
      %v696 = vpop.xlane.xlu0 %695
      %v697 = vperm.slane %v189, 0
      %v698 = vadd.f32 %v651, %v697
      %v699 = vadd.f32 %v654, %v697
      %v700 = vadd.f32 %v657, %v697
      %v701 = vadd.f32 %v660, %v697
      %v702 = vadd.f32 %v663, %v697
      %v703 = vadd.f32 %v666, %v697
      %v704 = vadd.f32 %v669, %v697
      %v705 = vadd.f32 %v672, %v697
      %v706 = vadd.f32 %v675, %v697
      %v707 = vadd.f32 %v678, %v697
      %v708 = vadd.f32 %v681, %v697
      %v709 = vadd.f32 %v684, %v697
      %v710 = vadd.f32 %v687, %v697
      %v711 = vadd.f32 %v690, %v697
      %v712 = vadd.f32 %v693, %v697
      %v713 = vadd.f32 %v696, %v697
      %v714 = vmul.f32 %v698, 0.5
      %v715 = vmul.f32 %v699, 0.5
      %v716 = vmul.f32 %v700, 0.5
      %v717 = vmul.f32 %v701, 0.5
      %v718 = vmul.f32 %v702, 0.5
      %v719 = vmul.f32 %v703, 0.5
      %v720 = vmul.f32 %v704, 0.5
      %v721 = vmul.f32 %v705, 0.5
      %v722 = vmul.f32 %v706, 0.5
      %v723 = vmul.f32 %v707, 0.5
      %v724 = vmul.f32 %v708, 0.5
      %v725 = vmul.f32 %v709, 0.5
      %v726 = vmul.f32 %v710, 0.5
      %v727 = vmul.f32 %v711, 0.5
      %v728 = vmul.f32 %v712, 0.5
      %v729 = vmul.f32 %v713, 0.5
      %v730 = vtanh.pop %v714
      %v731 = vtanh.pop %v715
      %v732 = vtanh.pop %v716
      %v733 = vtanh.pop %v717
      %v734 = vtanh.pop %v718
      %v735 = vtanh.pop %v719
      %v736 = vtanh.pop %v720
      %v737 = vtanh.pop %v721
      %v738 = vtanh.pop %v722
      %v739 = vtanh.pop %v723
      %v740 = vtanh.pop %v724
      %v741 = vtanh.pop %v725
      %v742 = vtanh.pop %v726
      %v743 = vtanh.pop %v727
      %v744 = vtanh.pop %v728
      %v745 = vtanh.pop %v729
      %v746 = vadd.f32 %v730, 1.0
      %v747 = vadd.f32 %v731, 1.0
      %v748 = vadd.f32 %v732, 1.0
      %v749 = vadd.f32 %v733, 1.0
      %v750 = vadd.f32 %v734, 1.0
      %v751 = vadd.f32 %v735, 1.0
      %v752 = vadd.f32 %v736, 1.0
      %v753 = vadd.f32 %v737, 1.0
      %v754 = vadd.f32 %v738, 1.0
      %v755 = vadd.f32 %v739, 1.0
      %v756 = vadd.f32 %v740, 1.0
      %v757 = vadd.f32 %v741, 1.0
      %v758 = vadd.f32 %v742, 1.0
      %v759 = vadd.f32 %v743, 1.0
      %v760 = vadd.f32 %v744, 1.0
      %v761 = vadd.f32 %v745, 1.0
      %v762 = vmul.f32 %v746, 0.5
      %v763 = vmul.f32 %v747, 0.5
      %v764 = vmul.f32 %v748, 0.5
      %v765 = vmul.f32 %v749, 0.5
      %v766 = vmul.f32 %v750, 0.5
      %v767 = vmul.f32 %v751, 0.5
      %v768 = vmul.f32 %v752, 0.5
      %v769 = vmul.f32 %v753, 0.5
      %v770 = vmul.f32 %v754, 0.5
      %v771 = vmul.f32 %v755, 0.5
      %v772 = vmul.f32 %v756, 0.5
      %v773 = vmul.f32 %v757, 0.5
      %v774 = vmul.f32 %v758, 0.5
      %v775 = vmul.f32 %v759, 0.5
      %v776 = vmul.f32 %v760, 0.5
      %v777 = vmul.f32 %v761, 0.5
      %vm778 = vcmask 7168
      %779 = vst.msk [vmem:[%s172] sm:$0xff] %vm778, %v762
      %780 = vst.msk [vmem:[%s172 + $0x8] sm:$0xff] %vm778, %v763
      %781 = vst.msk [vmem:[%s172 + $0x10] sm:$0xff] %vm778, %v764
      %782 = vst.msk [vmem:[%s172 + $0x18] sm:$0xff] %vm778, %v765
      %783 = vst.msk [vmem:[%s172 + $0x20] sm:$0xff] %vm778, %v766
      %784 = vst.msk [vmem:[%s172 + $0x28] sm:$0xff] %vm778, %v767
      %785 = vst.msk [vmem:[%s172 + $0x30] sm:$0xff] %vm778, %v768
      %786 = vst.msk [vmem:[%s172 + $0x38] sm:$0xff] %vm778, %v769
      %787 = vst.msk [vmem:[%s172 + $0x40] sm:$0xff] %vm778, %v770
      %788 = vst.msk [vmem:[%s172 + $0x48] sm:$0xff] %vm778, %v771
      %789 = vst.msk [vmem:[%s172 + $0x50] sm:$0xff] %vm778, %v772
      %790 = vst.msk [vmem:[%s172 + $0x58] sm:$0xff] %vm778, %v773
      %791 = vst.msk [vmem:[%s172 + $0x60] sm:$0xff] %vm778, %v774
      %792 = vst.msk [vmem:[%s172 + $0x68] sm:$0xff] %vm778, %v775
      %793 = vst.msk [vmem:[%s172 + $0x70] sm:$0xff] %vm778, %v776
      %794 = vst.msk [vmem:[%s172 + $0x78] sm:$0xff] %vm778, %v777
      %s795 = smul.u32 16, %s14
      %p796 = scmp.lt.s32.totalorder %s795, 31
      %s797 = scalar_select %p796, %s795, 31
      %s798 = smul.addr %s797, 8
      %s799 = scalar_lea.vmem %s3, %s798
      // Predicated region
      $region33: #{net_forward.1} parent=31 // pred_check
        %p800 = pneg %p100
      $region34: #{net_forward.1} parent=31 // pred_check_branch
        %802 = sbr.rel (%p800) target = $region36
      $region35: #{net_forward.1} parent=31 // pred_region
        %s803 = smul.u32 16, %s14
      $region36: #{net_forward.1} parent=31 // pred_fallthru
        _
    $region32: #{net_forward.1} parent=5 // pred_fallthru
      _
    %p804 = scmp.le.s32.totalorder 2, %s9
    // Predicated region
    $region37: #{net_forward.1} parent=5 // pred_check
      %p805 = pneg %p804
    $region38: #{net_forward.1} parent=5 // pred_check_branch
      %807 = sbr.rel (%p805) target = $region40
    $region39: #{net_forward.1} parent=5 // pred_region
      %s808 = ssub.s32 %s9, 2
      // Predicated region
      $region41: #{net_forward.1} parent=39 // pred_check
        %p809 = pneg %p106
      $region42: #{net_forward.1} parent=39 // pred_check_branch
        %811 = sbr.rel (%p809) target = $region44
      $region43: #{net_forward.1} parent=39 // pred_region
        %s812 = smul.u32 16, %s15
        %p813 = scmp.lt.s32.totalorder %s812, 31
        %s814 = scalar_select %p813, %s812, 31
        %s815 = smul.addr %s814, 8
        %s816 = scalar_lea.vmem %s3, %s815
      $region44: #{net_forward.1} parent=39 // pred_fallthru
        _
    $region40: #{net_forward.1} parent=5 // pred_fallthru
      _
  $region6: #{net_forward.1} parent=0 // loop_footer
    %s13 = sadd.s32 1, %s9
  $region7: #{net_forward.1} parent=0 // loop_footer_branch
    %8 = sbr.rel target = $region3
  $region8: #{net_forward.1} parent=0 // loop_exit
    _

</llo_original>
